<compile_context>
chip_gen: v5e
topology: v5e:2x2
jax: 0.10.0
libtpu: 0.0.40
codegen_flags: <defaults>
</compile_context>

<pallas_src>
import jax
import jax.numpy as jnp
from jax import lax
from jax.experimental import pallas as pl
from jax.experimental.pallas import tpu as pltpu


def _clip_loss_kernel(a_ref, bd_ref, b_ref, binv_ref, out_ref,
                      an_scr, sumexp_scr, diag_scr):
    """One (query-tile i, key-tile k) step of the CLIP contrastive loss.

    a_ref   : (TQ, D)  img1 rows for query tile i (raw, un-normalized)
    bd_ref  : (TQ, D)  img2 rows aligned with tile i (diagonal partners)
    b_ref   : (TK, D)  img2 key tile k (raw, un-normalized)
    binv_ref: (1, TK)  precomputed f32 inverse L2 norms of key tile k
    out_ref : (8, 128) per-query-tile partial sum, written at the last k
    an_scr  : (TQ, D)  normalized queries (MXU dtype), filled at k == 0
    sumexp_scr, diag_scr : (TQ, 1) f32 running sum-of-exp / diagonal logits
    """
    k = pl.program_id(1)

    @pl.when(k == 0)
    def _():
        # Normalize the TQ query rows (and their diagonal partners) once per
        # query tile, in f32.  rsqrt(max(ssq, 1e-24)) == 1 / max(||v||, 1e-12),
        # matching F.normalize's eps.
        a = a_ref[...].astype(jnp.float32)
        an = a * lax.rsqrt(
            jnp.maximum(jnp.sum(a * a, axis=-1, keepdims=True), 1e-24))
        bd = bd_ref[...].astype(jnp.float32)
        bdn = bd * lax.rsqrt(
            jnp.maximum(jnp.sum(bd * bd, axis=-1, keepdims=True), 1e-24))
        # Diagonal logits from the f32 normalized vectors (no bf16 round-trip).
        diag_scr[...] = jnp.sum(an * bdn, axis=-1, keepdims=True)
        an_scr[...] = an.astype(an_scr.dtype)
        sumexp_scr[...] = jnp.zeros_like(sumexp_scr)

    # logits = a_norm @ keys.T (contract D on both operands -> no transpose),
    # f32 accumulation.  Key normalization is applied as a column scale using
    # the precomputed inverse norms, so raw keys feed the MXU.
    logits = lax.dot_general(
        an_scr[...], b_ref[...],
        dimension_numbers=(((1,), (1,)), ((), ())),
        preferred_element_type=jnp.float32,
    )
    logits = logits * binv_ref[...]                 # (TQ, TK) * (1, TK)

    # logit_scale == 1 and both sides are unit-norm => logits in [-1, 1], so
    # the row-max pass of logsumexp is unnecessary (no overflow possible).
    # TODO(synk): re-add the running max if logit_scale becomes learnable.
    sumexp_scr[...] += jnp.sum(jnp.exp(logits), axis=-1, keepdims=True)

    @pl.when(k == pl.num_programs(1) - 1)
    def _():
        partial = jnp.sum(jnp.log(sumexp_scr[...]) - diag_scr[...])
        out_ref[...] = partial + jnp.zeros(out_ref.shape, jnp.float32)


def _pick_row_tile(b):
    # Cap at B//2 so the "parallel" row axis has >= 2 tiles (keeps both of
    # v7x's TensorCores busy).  NOTE: 128 already saturates v5e's 4x(128x128)
    # MXU; 256 helps the 256-wide MXUs on v6e/v7x.
    cap = b // 2 if b >= 16 else b
    for t in (256, 128, 64, 32, 16, 8):
        if t <= cap and b % t == 0:
            return t
    return b  # fallback: single (possibly sublane-padded) block


def _pick_key_tile(b, d, itemsize):
    # Key (B) axis tiling keeps VMEM independent of B.  Only tile when B is a
    # multiple of 128 (lane-aligned inverse-norm blocks); otherwise keep the
    # keys resident in a single block.
    if b % 128 != 0:
        return b
    budget = 8 * 1024 * 1024              # per key block, before double-buffering
    best = 128
    for t in (256, 512, 1024, 2048):
        if b % t == 0 and 2 * t * d * itemsize <= budget:
            best = t
    return best


def _vmem_limit_bytes():
    # Derive the scoped-VMEM limit per chip (v7x: 64 MiB physical, v5e/v6e: 128).
    try:
        cap = int(pltpu.get_tpu_info().vmem_capacity_bytes)
    except Exception:
        cap = 64 * 1024 * 1024
    return int(min(int(cap * 0.9), 100 * 1024 * 1024))


def clip_loss(x, *, tq=None, tk=None):
    """x: [B, 2, D] array. Returns scalar f32 CLIP loss (logit_scale = 1.0)."""
    b_sz, two, d = x.shape
    assert two == 2

    # Split the img1/img2 planes in the wrapper so the kernel only ever loads
    # what it needs (keys are img2 only).
    img1 = x[:, 0, :]                      # queries          [B, D]
    img2 = x[:, 1, :]                      # keys + diagonals [B, D]

    # Hoisted key normalization: per-key inverse L2 norms (tiny [1, B] f32),
    # applied as a logits column scale inside the kernel.
    img2_f32 = img2.astype(jnp.float32)
    inv_norm2 = lax.rsqrt(
        jnp.maximum(jnp.sum(img2_f32 * img2_f32, axis=-1), 1e-24)
    ).reshape(1, b_sz)

    itemsize = jnp.dtype(x.dtype).itemsize
    if tq is None:
        tq = _pick_row_tile(b_sz)
    if tk is None:
        tk = _pick_key_tile(b_sz, d, itemsize)
    assert b_sz % tq == 0 and b_sz % tk == 0
    nq = b_sz // tq
    nk = b_sz // tk

    # bf16 inputs feed the MXU in bf16 (f32 accumulation); f32 stays f32.
    mm_dt = jnp.bfloat16 if x.dtype == jnp.bfloat16 else jnp.float32

    key_passes = nq if nk > 1 else 1
    cost = pl.CostEstimate(
        flops=2 * b_sz * b_sz * d + 3 * b_sz * b_sz + 8 * b_sz * d,
        transcendentals=b_sz * b_sz + 4 * b_sz,
        bytes_accessed=int(2 * b_sz * d * itemsize        # queries + diag rows
                           + key_passes * b_sz * d * itemsize
                           + key_passes * b_sz * 4
                           + nq * 8 * 128 * 4),
    )

    def run(single_buffer_resident):
        key_kwargs = {}
        if single_buffer_resident:
            # Resident (constant-index) key blocks gain nothing from double
            # buffering; single-buffer them to halve their VMEM footprint.
            key_kwargs = dict(pipeline_mode=pl.Buffered(1))
        in_specs = [
            pl.BlockSpec((tq, d), lambda i, k: (i, 0)),              # queries
            pl.BlockSpec((tq, d), lambda i, k: (i, 0)),              # diag rows
            pl.BlockSpec((tk, d), lambda i, k: (k, 0), **key_kwargs),
            pl.BlockSpec((1, tk), lambda i, k: (0, k), **key_kwargs),
        ]
        return pl.pallas_call(
            _clip_loss_kernel,
            out_shape=jax.ShapeDtypeStruct((nq * 8, 128), jnp.float32),
            grid_spec=pltpu.PrefetchScalarGridSpec(
                num_scalar_prefetch=0,
                grid=(nq, nk),                    # reduction (key) axis last
                in_specs=in_specs,
                out_specs=pl.BlockSpec((8, 128), lambda i, k: (i, 0)),
                scratch_shapes=[
                    pltpu.VMEM((tq, d), mm_dt),        # normalized queries
                    pltpu.VMEM((tq, 1), jnp.float32),  # running sum of exp
                    pltpu.VMEM((tq, 1), jnp.float32),  # diagonal logits
                ],
            ),
            compiler_params=pltpu.CompilerParams(
                dimension_semantics=("parallel", "arbitrary"),
                vmem_limit_bytes=_vmem_limit_bytes(),
            ),
            cost_estimate=cost,
        )(img1, img2, img2, inv_norm2)

    if nk == 1:
        try:
            out = run(True)
        except Exception:   # pipeline_mode / Buffered(1) unsupported -> default
            out = run(False)
    else:
        out = run(False)

    partials = out.reshape(nq, 8, 128)[:, 0, 0]
    return jnp.sum(partials) / b_sz


def clip_loss_ref(x):
    """Pure-JAX reference mirroring the PyTorch module (f32 math)."""
    img1 = x[:, 0, :].astype(jnp.float32)
    img2 = x[:, 1, :].astype(jnp.float32)

    def nrm(v):
        return v / jnp.maximum(jnp.linalg.norm(v, axis=-1, keepdims=True), 1e-12)

    logits = nrm(img1) @ nrm(img2).T
    n = logits.shape[0]
    logp = jax.nn.log_softmax(logits, axis=-1)
    return -jnp.mean(logp[jnp.arange(n), jnp.arange(n)])


if __name__ == "__main__":
    key = jax.random.PRNGKey(0)

    # (B, D), dtype, tq, tk, tolerance.  Case 3 forces key-axis tiling
    # (nq=4, nk=2) to exercise the online sum-of-exp accumulation; case 4
    # checks the bf16 MXU path with a looser tolerance.
    cases = [
        ((8, 32), jnp.float32, None, None, 1e-4),
        ((24, 128), jnp.float32, None, None, 1e-4),
        ((256, 64), jnp.float32, 64, 128, 1e-4),
        ((24, 128), jnp.bfloat16, None, None, 5e-2),
    ]
    for (b_sz, d), dtype, tq, tk, tol in cases:
        key, sub = jax.random.split(key)
        x = jax.random.normal(sub, (b_sz, 2, d), dtype=jnp.float32).astype(dtype)
        loss = jax.block_until_ready(clip_loss(x, tq=tq, tk=tk))
        ref = jax.block_until_ready(clip_loss_ref(x))
        assert jnp.allclose(loss, ref, atol=tol, rtol=tol), (
            b_sz, d, dtype, loss, ref)

    print("KERNEL_OK")
</pallas_src>

<mosaic_0001>
module attributes {stable_mosaic.version = 11 : i64} {
  func.func @_clip_loss_kernel(%arg0: i32, %arg1: i32, %arg2: memref<8x32xf32, #tpu.memory_space<vmem>>, %arg3: memref<8x32xf32, #tpu.memory_space<vmem>>, %arg4: memref<8x32xf32, #tpu.memory_space<vmem>>, %arg5: memref<1x8xf32, #tpu.memory_space<vmem>>, %arg6: memref<8x128xf32, #tpu.memory_space<vmem>>, %arg7: memref<8x32xf32, #tpu.memory_space<vmem>>, %arg8: memref<8x1xf32, #tpu.memory_space<vmem>>, %arg9: memref<8x1xf32, #tpu.memory_space<vmem>>) attributes {dimension_semantics = [#tpu.dimension_semantics<parallel>, #tpu.dimension_semantics<arbitrary>], iteration_bounds = array<i64: 1, 1>, scalar_prefetch = 0 : i64, scratch_operands = 3 : i64, tpu.core_type = #tpu.core_type<tc>, window_params = [{transform_indices = @transform_0, window_bounds = array<i64: 8, 32>}, {transform_indices = @transform_1, window_bounds = array<i64: 8, 32>}, {pipeline_mode = #tpu.pipeline_mode<synchronous>, transform_indices = @transform_2, window_bounds = array<i64: 8, 32>}, {pipeline_mode = #tpu.pipeline_mode<synchronous>, transform_indices = @transform_3, window_bounds = array<i64: 1, 8>}, {transform_indices = @transform_4, window_bounds = array<i64: 8, 128>}]} {
    %c0_i32 = arith.constant 0 : i32
    %0 = arith.cmpi eq, %arg1, %c0_i32 : i32
    %1 = arith.extui %0 : i1 to i32
    %c0_i32_0 = arith.constant 0 : i32
    %2 = arith.cmpi ne, %1, %c0_i32_0 : i32
    scf.if %2 {
      %c0_13 = arith.constant 0 : index
      %c0_14 = arith.constant 0 : index
      %18 = vector.load %arg2[%c0_13, %c0_14] : memref<8x32xf32, #tpu.memory_space<vmem>>, vector<8x32xf32>
      %19 = arith.mulf %18, %18 : vector<8x32xf32>
      %cst_15 = arith.constant dense<0.000000e+00> : vector<8xf32>
      %20 = vector.multi_reduction <add>, %19, %cst_15 [1] : vector<8x32xf32> to vector<8xf32>
      %21 = vector.shape_cast %20 : vector<8xf32> to vector<8x1xf32>
      %cst_16 = arith.constant 1.000000e-24 : f32
      %22 = vector.broadcast %cst_16 : f32 to vector<8x1xf32>
      %23 = arith.maximumf %21, %22 : vector<8x1xf32>
      %24 = math.rsqrt %23 : vector<8x1xf32>
      %25 = vector.broadcast %24 : vector<8x1xf32> to vector<8x32xf32>
      %26 = arith.mulf %18, %25 : vector<8x32xf32>
      %c0_17 = arith.constant 0 : index
      %c0_18 = arith.constant 0 : index
      %27 = vector.load %arg3[%c0_17, %c0_18] : memref<8x32xf32, #tpu.memory_space<vmem>>, vector<8x32xf32>
      %28 = arith.mulf %27, %27 : vector<8x32xf32>
      %cst_19 = arith.constant dense<0.000000e+00> : vector<8xf32>
      %29 = vector.multi_reduction <add>, %28, %cst_19 [1] : vector<8x32xf32> to vector<8xf32>
      %30 = vector.shape_cast %29 : vector<8xf32> to vector<8x1xf32>
      %cst_20 = arith.constant 1.000000e-24 : f32
      %31 = vector.broadcast %cst_20 : f32 to vector<8x1xf32>
      %32 = arith.maximumf %30, %31 : vector<8x1xf32>
      %33 = math.rsqrt %32 : vector<8x1xf32>
      %34 = vector.broadcast %33 : vector<8x1xf32> to vector<8x32xf32>
      %35 = arith.mulf %27, %34 : vector<8x32xf32>
      %36 = arith.mulf %26, %35 : vector<8x32xf32>
      %cst_21 = arith.constant dense<0.000000e+00> : vector<8xf32>
      %37 = vector.multi_reduction <add>, %36, %cst_21 [1] : vector<8x32xf32> to vector<8xf32>
      %38 = vector.shape_cast %37 : vector<8xf32> to vector<8x1xf32>
      %c0_22 = arith.constant 0 : index
      %c0_23 = arith.constant 0 : index
      %39 = vector.load %arg9[%c0_22, %c0_23] : memref<8x1xf32, #tpu.memory_space<vmem>>, vector<8x1xf32>
      tpu.vector_store %arg9[%c0_22, %c0_23], %38 {strides = array<i32>} : memref<8x1xf32, #tpu.memory_space<vmem>>, vector<8x1xf32>,
      %c0_24 = arith.constant 0 : index
      %c0_25 = arith.constant 0 : index
      %40 = vector.load %arg7[%c0_24, %c0_25] : memref<8x32xf32, #tpu.memory_space<vmem>>, vector<8x32xf32>
      tpu.vector_store %arg7[%c0_24, %c0_25], %26 {strides = array<i32>} : memref<8x32xf32, #tpu.memory_space<vmem>>, vector<8x32xf32>,
      %cst_26 = arith.constant 0.000000e+00 : f32
      %41 = vector.broadcast %cst_26 : f32 to vector<8x1xf32>
      %c0_27 = arith.constant 0 : index
      %c0_28 = arith.constant 0 : index
      %42 = vector.load %arg8[%c0_27, %c0_28] : memref<8x1xf32, #tpu.memory_space<vmem>>, vector<8x1xf32>
      tpu.vector_store %arg8[%c0_27, %c0_28], %41 {strides = array<i32>} : memref<8x1xf32, #tpu.memory_space<vmem>>, vector<8x1xf32>,
    } else {
    }
    %c0 = arith.constant 0 : index
    %c0_1 = arith.constant 0 : index
    %3 = vector.load %arg7[%c0, %c0_1] : memref<8x32xf32, #tpu.memory_space<vmem>>, vector<8x32xf32>
    %c0_2 = arith.constant 0 : index
    %c0_3 = arith.constant 0 : index
    %4 = vector.load %arg4[%c0_2, %c0_3] : memref<8x32xf32, #tpu.memory_space<vmem>>, vector<8x32xf32>
    %cst = arith.constant dense<0.000000e+00> : vector<8x8xf32>
    %5 = tpu.matmul %3, %4, %cst {dimension_numbers = #tpu.dot_dimension_numbers<[1], [1], [0], [0], [0, 0, 1, 0], [], []>} : vector<8x32xf32>, vector<8x32xf32>, vector<8x8xf32> -> vector<8x8xf32>
    %c0_4 = arith.constant 0 : index
    %c0_5 = arith.constant 0 : index
    %6 = vector.load %arg5[%c0_4, %c0_5] : memref<1x8xf32, #tpu.memory_space<vmem>>, vector<1x8xf32>
    %7 = vector.broadcast %6 : vector<1x8xf32> to vector<8x8xf32>
    %8 = arith.mulf %5, %7 : vector<8x8xf32>
    %c0_6 = arith.constant 0 : index
    %c0_7 = arith.constant 0 : index
    %9 = vector.load %arg8[%c0_6, %c0_7] : memref<8x1xf32, #tpu.memory_space<vmem>>, vector<8x1xf32>
    %10 = math.exp %8 : vector<8x8xf32>
    %cst_8 = arith.constant dense<0.000000e+00> : vector<8xf32>
    %11 = vector.multi_reduction <add>, %10, %cst_8 [1] : vector<8x8xf32> to vector<8xf32>
    %12 = vector.shape_cast %11 : vector<8xf32> to vector<8x1xf32>
    %13 = arith.addf %9, %12 : vector<8x1xf32>
    %c0_9 = arith.constant 0 : index
    %c0_10 = arith.constant 0 : index
    %14 = vector.load %arg8[%c0_9, %c0_10] : memref<8x1xf32, #tpu.memory_space<vmem>>, vector<8x1xf32>
    tpu.vector_store %arg8[%c0_9, %c0_10], %13 {strides = array<i32>} : memref<8x1xf32, #tpu.memory_space<vmem>>, vector<8x1xf32>,
    %c0_i32_11 = arith.constant 0 : i32
    %15 = arith.cmpi eq, %arg1, %c0_i32_11 : i32
    %16 = arith.extui %15 : i1 to i32
    %c0_i32_12 = arith.constant 0 : i32
    %17 = arith.cmpi ne, %16, %c0_i32_12 : i32
    scf.if %17 {
      %c0_13 = arith.constant 0 : index
      %c0_14 = arith.constant 0 : index
      %18 = vector.load %arg8[%c0_13, %c0_14] : memref<8x1xf32, #tpu.memory_space<vmem>>, vector<8x1xf32>
      %19 = math.log %18 : vector<8x1xf32>
      %c0_15 = arith.constant 0 : index
      %c0_16 = arith.constant 0 : index
      %20 = vector.load %arg9[%c0_15, %c0_16] : memref<8x1xf32, #tpu.memory_space<vmem>>, vector<8x1xf32>
      %21 = arith.subf %19, %20 : vector<8x1xf32>
      %22 = vector.shape_cast %21 : vector<8x1xf32> to vector<1x8x1xf32>
      %cst_17 = arith.constant dense<0.000000e+00> : vector<1xf32>
      %23 = vector.multi_reduction <add>, %22, %cst_17 [1, 2] : vector<1x8x1xf32> to vector<1xf32>
      %24 = vector.shape_cast %23 : vector<1xf32> to vector<1x1x1xf32>
      %25 = vector.extract %24[0, 0, 0] : f32 from vector<1x1x1xf32>
      %cst_18 = arith.constant 0.000000e+00 : f32
      %26 = vector.broadcast %cst_18 : f32 to vector<8x128xf32>
      %27 = vector.broadcast %25 : f32 to vector<8x128xf32>
      %28 = arith.addf %27, %26 : vector<8x128xf32>
      %c0_19 = arith.constant 0 : index
      %c0_20 = arith.constant 0 : index
      %29 = vector.load %arg6[%c0_19, %c0_20] : memref<8x128xf32, #tpu.memory_space<vmem>>, vector<8x128xf32>
      tpu.vector_store %arg6[%c0_19, %c0_20], %28 {strides = array<i32>} : memref<8x128xf32, #tpu.memory_space<vmem>>, vector<8x128xf32>,
    } else {
    }
    return
  }
  func.func @transform_0(%arg0: i32, %arg1: i32) -> (i32, i32) {
    %c0_i32 = arith.constant 0 : i32
    %c0_i32_0 = arith.constant 0 : i32
    return %arg0, %c0_i32 : i32, i32
  }
  func.func @transform_1(%arg0: i32, %arg1: i32) -> (i32, i32) {
    %c0_i32 = arith.constant 0 : i32
    %c0_i32_0 = arith.constant 0 : i32
    return %arg0, %c0_i32 : i32, i32
  }
  func.func @transform_2(%arg0: i32, %arg1: i32) -> (i32, i32) {
    %c0_i32 = arith.constant 0 : i32
    %c0_i32_0 = arith.constant 0 : i32
    return %arg1, %c0_i32 : i32, i32
  }
  func.func @transform_3(%arg0: i32, %arg1: i32) -> (i32, i32) {
    %c0_i32 = arith.constant 0 : i32
    %c0_i32_0 = arith.constant 0 : i32
    return %c0_i32, %arg1 : i32, i32
  }
  func.func @transform_4(%arg0: i32, %arg1: i32) -> (i32, i32) {
    %c0_i32 = arith.constant 0 : i32
    %c0_i32_0 = arith.constant 0 : i32
    return %arg0, %c0_i32 : i32, i32
  }
}

module attributes {stable_mosaic.version = 11 : i64} {
  func.func @_clip_loss_kernel(%arg0: i32, %arg1: i32, %arg2: memref<8x32xf32, #tpu.memory_space<vmem>>, %arg3: memref<8x32xf32, #tpu.memory_space<vmem>>, %arg4: memref<8x32xf32, #tpu.memory_space<vmem>>, %arg5: memref<1x8xf32, #tpu.memory_space<vmem>>, %arg6: memref<8x128xf32, #tpu.memory_space<vmem>>, %arg7: memref<8x32xf32, #tpu.memory_space<vmem>>, %arg8: memref<8x1xf32, #tpu.memory_space<vmem>>, %arg9: memref<8x1xf32, #tpu.memory_space<vmem>>) attributes {dimension_semantics = [#tpu.dimension_semantics<parallel>, #tpu.dimension_semantics<arbitrary>], iteration_bounds = array<i64: 1, 1>, scalar_prefetch = 0 : i64, scratch_operands = 3 : i64, tpu.core_type = #tpu.core_type<tc>, window_params = [{transform_indices = @transform_0, window_bounds = array<i64: 8, 32>}, {transform_indices = @transform_1, window_bounds = array<i64: 8, 32>}, {transform_indices = @transform_2, window_bounds = array<i64: 8, 32>}, {transform_indices = @transform_3, window_bounds = array<i64: 1, 8>}, {transform_indices = @transform_4, window_bounds = array<i64: 8, 128>}]} {
    %c0_i32 = arith.constant 0 : i32
    %0 = arith.cmpi eq, %arg1, %c0_i32 : i32
    %1 = arith.extui %0 : i1 to i32
    %c0_i32_0 = arith.constant 0 : i32
    %2 = arith.cmpi ne, %1, %c0_i32_0 : i32
    scf.if %2 {
      %c0_13 = arith.constant 0 : index
      %c0_14 = arith.constant 0 : index
      %18 = vector.load %arg2[%c0_13, %c0_14] : memref<8x32xf32, #tpu.memory_space<vmem>>, vector<8x32xf32>
      %19 = arith.mulf %18, %18 : vector<8x32xf32>
      %cst_15 = arith.constant dense<0.000000e+00> : vector<8xf32>
      %20 = vector.multi_reduction <add>, %19, %cst_15 [1] : vector<8x32xf32> to vector<8xf32>
      %21 = vector.shape_cast %20 : vector<8xf32> to vector<8x1xf32>
      %cst_16 = arith.constant 1.000000e-24 : f32
      %22 = vector.broadcast %cst_16 : f32 to vector<8x1xf32>
      %23 = arith.maximumf %21, %22 : vector<8x1xf32>
      %24 = math.rsqrt %23 : vector<8x1xf32>
      %25 = vector.broadcast %24 : vector<8x1xf32> to vector<8x32xf32>
      %26 = arith.mulf %18, %25 : vector<8x32xf32>
      %c0_17 = arith.constant 0 : index
      %c0_18 = arith.constant 0 : index
      %27 = vector.load %arg3[%c0_17, %c0_18] : memref<8x32xf32, #tpu.memory_space<vmem>>, vector<8x32xf32>
      %28 = arith.mulf %27, %27 : vector<8x32xf32>
      %cst_19 = arith.constant dense<0.000000e+00> : vector<8xf32>
      %29 = vector.multi_reduction <add>, %28, %cst_19 [1] : vector<8x32xf32> to vector<8xf32>
      %30 = vector.shape_cast %29 : vector<8xf32> to vector<8x1xf32>
      %cst_20 = arith.constant 1.000000e-24 : f32
      %31 = vector.broadcast %cst_20 : f32 to vector<8x1xf32>
      %32 = arith.maximumf %30, %31 : vector<8x1xf32>
      %33 = math.rsqrt %32 : vector<8x1xf32>
      %34 = vector.broadcast %33 : vector<8x1xf32> to vector<8x32xf32>
      %35 = arith.mulf %27, %34 : vector<8x32xf32>
      %36 = arith.mulf %26, %35 : vector<8x32xf32>
      %cst_21 = arith.constant dense<0.000000e+00> : vector<8xf32>
      %37 = vector.multi_reduction <add>, %36, %cst_21 [1] : vector<8x32xf32> to vector<8xf32>
      %38 = vector.shape_cast %37 : vector<8xf32> to vector<8x1xf32>
      %c0_22 = arith.constant 0 : index
      %c0_23 = arith.constant 0 : index
      %39 = vector.load %arg9[%c0_22, %c0_23] : memref<8x1xf32, #tpu.memory_space<vmem>>, vector<8x1xf32>
      tpu.vector_store %arg9[%c0_22, %c0_23], %38 {strides = array<i32>} : memref<8x1xf32, #tpu.memory_space<vmem>>, vector<8x1xf32>,
      %c0_24 = arith.constant 0 : index
      %c0_25 = arith.constant 0 : index
      %40 = vector.load %arg7[%c0_24, %c0_25] : memref<8x32xf32, #tpu.memory_space<vmem>>, vector<8x32xf32>
      tpu.vector_store %arg7[%c0_24, %c0_25], %26 {strides = array<i32>} : memref<8x32xf32, #tpu.memory_space<vmem>>, vector<8x32xf32>,
      %cst_26 = arith.constant 0.000000e+00 : f32
      %41 = vector.broadcast %cst_26 : f32 to vector<8x1xf32>
      %c0_27 = arith.constant 0 : index
      %c0_28 = arith.constant 0 : index
      %42 = vector.load %arg8[%c0_27, %c0_28] : memref<8x1xf32, #tpu.memory_space<vmem>>, vector<8x1xf32>
      tpu.vector_store %arg8[%c0_27, %c0_28], %41 {strides = array<i32>} : memref<8x1xf32, #tpu.memory_space<vmem>>, vector<8x1xf32>,
    } else {
    }
    %c0 = arith.constant 0 : index
    %c0_1 = arith.constant 0 : index
    %3 = vector.load %arg7[%c0, %c0_1] : memref<8x32xf32, #tpu.memory_space<vmem>>, vector<8x32xf32>
    %c0_2 = arith.constant 0 : index
    %c0_3 = arith.constant 0 : index
    %4 = vector.load %arg4[%c0_2, %c0_3] : memref<8x32xf32, #tpu.memory_space<vmem>>, vector<8x32xf32>
    %cst = arith.constant dense<0.000000e+00> : vector<8x8xf32>
    %5 = tpu.matmul %3, %4, %cst {dimension_numbers = #tpu.dot_dimension_numbers<[1], [1], [0], [0], [0, 0, 1, 0], [], []>} : vector<8x32xf32>, vector<8x32xf32>, vector<8x8xf32> -> vector<8x8xf32>
    %c0_4 = arith.constant 0 : index
    %c0_5 = arith.constant 0 : index
    %6 = vector.load %arg5[%c0_4, %c0_5] : memref<1x8xf32, #tpu.memory_space<vmem>>, vector<1x8xf32>
    %7 = vector.broadcast %6 : vector<1x8xf32> to vector<8x8xf32>
    %8 = arith.mulf %5, %7 : vector<8x8xf32>
    %c0_6 = arith.constant 0 : index
    %c0_7 = arith.constant 0 : index
    %9 = vector.load %arg8[%c0_6, %c0_7] : memref<8x1xf32, #tpu.memory_space<vmem>>, vector<8x1xf32>
    %10 = math.exp %8 : vector<8x8xf32>
    %cst_8 = arith.constant dense<0.000000e+00> : vector<8xf32>
    %11 = vector.multi_reduction <add>, %10, %cst_8 [1] : vector<8x8xf32> to vector<8xf32>
    %12 = vector.shape_cast %11 : vector<8xf32> to vector<8x1xf32>
    %13 = arith.addf %9, %12 : vector<8x1xf32>
    %c0_9 = arith.constant 0 : index
    %c0_10 = arith.constant 0 : index
    %14 = vector.load %arg8[%c0_9, %c0_10] : memref<8x1xf32, #tpu.memory_space<vmem>>, vector<8x1xf32>
    tpu.vector_store %arg8[%c0_9, %c0_10], %13 {strides = array<i32>} : memref<8x1xf32, #tpu.memory_space<vmem>>, vector<8x1xf32>,
    %c0_i32_11 = arith.constant 0 : i32
    %15 = arith.cmpi eq, %arg1, %c0_i32_11 : i32
    %16 = arith.extui %15 : i1 to i32
    %c0_i32_12 = arith.constant 0 : i32
    %17 = arith.cmpi ne, %16, %c0_i32_12 : i32
    scf.if %17 {
      %c0_13 = arith.constant 0 : index
      %c0_14 = arith.constant 0 : index
      %18 = vector.load %arg8[%c0_13, %c0_14] : memref<8x1xf32, #tpu.memory_space<vmem>>, vector<8x1xf32>
      %19 = math.log %18 : vector<8x1xf32>
      %c0_15 = arith.constant 0 : index
      %c0_16 = arith.constant 0 : index
      %20 = vector.load %arg9[%c0_15, %c0_16] : memref<8x1xf32, #tpu.memory_space<vmem>>, vector<8x1xf32>
      %21 = arith.subf %19, %20 : vector<8x1xf32>
      %22 = vector.shape_cast %21 : vector<8x1xf32> to vector<1x8x1xf32>
      %cst_17 = arith.constant dense<0.000000e+00> : vector<1xf32>
      %23 = vector.multi_reduction <add>, %22, %cst_17 [1, 2] : vector<1x8x1xf32> to vector<1xf32>
      %24 = vector.shape_cast %23 : vector<1xf32> to vector<1x1x1xf32>
      %25 = vector.extract %24[0, 0, 0] : f32 from vector<1x1x1xf32>
      %cst_18 = arith.constant 0.000000e+00 : f32
      %26 = vector.broadcast %cst_18 : f32 to vector<8x128xf32>
      %27 = vector.broadcast %25 : f32 to vector<8x128xf32>
      %28 = arith.addf %27, %26 : vector<8x128xf32>
      %c0_19 = arith.constant 0 : index
      %c0_20 = arith.constant 0 : index
      %29 = vector.load %arg6[%c0_19, %c0_20] : memref<8x128xf32, #tpu.memory_space<vmem>>, vector<8x128xf32>
      tpu.vector_store %arg6[%c0_19, %c0_20], %28 {strides = array<i32>} : memref<8x128xf32, #tpu.memory_space<vmem>>, vector<8x128xf32>,
    } else {
    }
    return
  }
  func.func @transform_0(%arg0: i32, %arg1: i32) -> (i32, i32) {
    %c0_i32 = arith.constant 0 : i32
    %c0_i32_0 = arith.constant 0 : i32
    return %arg0, %c0_i32 : i32, i32
  }
  func.func @transform_1(%arg0: i32, %arg1: i32) -> (i32, i32) {
    %c0_i32 = arith.constant 0 : i32
    %c0_i32_0 = arith.constant 0 : i32
    return %arg0, %c0_i32 : i32, i32
  }
  func.func @transform_2(%arg0: i32, %arg1: i32) -> (i32, i32) {
    %c0_i32 = arith.constant 0 : i32
    %c0_i32_0 = arith.constant 0 : i32
    return %arg1, %c0_i32 : i32, i32
  }
  func.func @transform_3(%arg0: i32, %arg1: i32) -> (i32, i32) {
    %c0_i32 = arith.constant 0 : i32
    %c0_i32_0 = arith.constant 0 : i32
    return %c0_i32, %arg1 : i32, i32
  }
  func.func @transform_4(%arg0: i32, %arg1: i32) -> (i32, i32) {
    %c0_i32 = arith.constant 0 : i32
    %c0_i32_0 = arith.constant 0 : i32
    return %arg0, %c0_i32 : i32, i32
  }
}

</mosaic_0001>

<llo_original>
// kernel: tpu_custom_call.1
$region0: #{tpu_custom_call.1}
  #allocation0 [shape = 'u32[]', space=smem, size = 0x4, offset = 0x4, fixed_abs, tag = 'smem constant byte address 0x4 - core index']
  #allocation1 [shape = 'u32[72,128]{1,0:T(1,128)}', space=vmem, size = 0x9000, scoped, tag = 'internal scratch']
  #allocation2 [shape = 'f32[8,32]{1,0:T(8,128)}', space=vmem, size = 0x1000, scoped, tag = 'scratch operand']
  #allocation3 [shape = 'f32[8,1]{1,0:T(8,128)}', space=vmem, size = 0x1000, scoped, tag = 'scratch operand']
  #allocation4 [shape = 'f32[8,1]{1,0:T(8,128)}', space=vmem, size = 0x1000, scoped, tag = 'scratch operand']
  %s0 = inlined_call_operand.hbm [shape: f32[8,32], index: 0, kind: input, shape index: {}]
  %s1 = inlined_call_operand.hbm [shape: f32[8,32], index: 1, kind: input, shape index: {}]
  %s2 = inlined_call_operand.hbm [shape: f32[8,32], index: 2, kind: input, shape index: {}]
  %s3 = inlined_call_operand.vmem [shape: f32[1,8], index: 3, kind: input, shape index: {}]
  %s4 = inlined_call_operand.hbm [shape: f32[8,128], index: 4, kind: output, shape index: {}]
  %s5 = sld [smem:[#allocation0]]
  $region46: #{tpu_custom_call.1} parent=0
    _
  %s7 = ssub.s32 1, %s5
  %s8 = scalar_select 0, %s7, %s5
  $region1: #{tpu_custom_call.1} parent=0
    #allocation5 [shape = 'u8[4096]{0}', space=vmem, size = 0x1000, scoped, tag = 'input window, operand 0, single buffered']
    #allocation6 [shape = 's32[1]{0}', space=sflag, size = 0x4, scoped, tag = 'scoped memory for tpu_custom_call.1']
    #allocation7 [shape = 's32[1]{0}', space=sflag, size = 0x4, scoped, tag = 'scoped memory for tpu_custom_call.1']
    #allocation8 [shape = 'u8[4096]{0}', space=vmem, size = 0x1000, scoped, tag = 'input window, operand 1, single buffered']
    #allocation9 [shape = 's32[1]{0}', space=sflag, size = 0x4, scoped, tag = 'scoped memory for tpu_custom_call.1']
    #allocation10 [shape = 'u8[4096]{0}', space=vmem, size = 0x1000, scoped, tag = 'input window, operand 2, single buffered']
    #allocation11 [shape = 'u8[4096]{0}', space=vmem, size = 0x1000, scoped, tag = 'output window, operand 0, single buffered']
    %9 = vsyncpa [#allocation6], 0
    %10 = vsyncpa [#allocation9], 0
    %11 = vsyncpa [#allocation7], 0
    // Predicated region
    $region2: #{tpu_custom_call.1} parent=1 // pred_check
      _
    $region3: #{tpu_custom_call.1} parent=1 // pred_check_branch
      %13 = sbr.rel (0) target = $region5
    $region4: #{tpu_custom_call.1} parent=1 // pred_region
      %15 = vsyncadd [#allocation6], 0
      %s17 = sshll.u32 %s0, 4
      %s18 = int_to_ptr.hbm [resolvable:$true] %s17
      %s19 = sshll.u32 [#allocation5], 4
      %s20 = int_to_ptr.vmem [resolvable:$true] %s19
      %22 = dma.hbm_to_vmem [thread:$0]  %s18, 128, %s20, [#allocation6]
    $region5: #{tpu_custom_call.1} parent=1 // pred_fallthru
      _
    // Predicated region
    $region6: #{tpu_custom_call.1} parent=1 // pred_check
      _
    $region7: #{tpu_custom_call.1} parent=1 // pred_check_branch
      %24 = sbr.rel (0) target = $region9
    $region8: #{tpu_custom_call.1} parent=1 // pred_region
      %26 = vsyncadd [#allocation9], 0
      %s28 = sshll.u32 %s1, 4
      %s29 = int_to_ptr.hbm [resolvable:$true] %s28
      %s30 = sshll.u32 [#allocation8], 4
      %s31 = int_to_ptr.vmem [resolvable:$true] %s30
      %33 = dma.hbm_to_vmem [thread:$0]  %s29, 128, %s31, [#allocation9]
    $region9: #{tpu_custom_call.1} parent=1 // pred_fallthru
      _
    // Predicated region
    $region10: #{tpu_custom_call.1} parent=1 // pred_check
      _
    $region11: #{tpu_custom_call.1} parent=1 // pred_check_branch
      %35 = sbr.rel (0) target = $region13
    $region12: #{tpu_custom_call.1} parent=1 // pred_region
      %37 = vsyncadd [#allocation9], 0
      %s39 = sshll.u32 %s2, 4
      %s40 = int_to_ptr.hbm [resolvable:$true] %s39
      %s41 = sshll.u32 [#allocation10], 4
      %s42 = int_to_ptr.vmem [resolvable:$true] %s41
      %44 = dma.hbm_to_vmem [thread:$0]  %s40, 128, %s42, [#allocation9]
    $region13: #{tpu_custom_call.1} parent=1 // pred_fallthru
      _
    // Predicated region
    $region14: #{tpu_custom_call.1} parent=1 // pred_check
      _
    $region15: #{tpu_custom_call.1} parent=1 // pred_check_branch
      %46 = sbr.rel (0) target = $region17
    $region16: #{tpu_custom_call.1} parent=1 // pred_region
      _
    $region17: #{tpu_custom_call.1} parent=1 // pred_fallthru
      _
    // Predicated region
    $region18: #{tpu_custom_call.1} parent=1 // pred_check
      _
    $region19: #{tpu_custom_call.1} parent=1 // pred_check_branch
      %48 = sbr.rel (0) target = $region21
    $region20: #{tpu_custom_call.1} parent=1 // pred_region
      %50 = dma.done [#allocation6], 128
    $region21: #{tpu_custom_call.1} parent=1 // pred_fallthru
      _
    // Predicated region
    $region22: #{tpu_custom_call.1} parent=1 // pred_check
      _
    $region23: #{tpu_custom_call.1} parent=1 // pred_check_branch
      %52 = sbr.rel (0) target = $region25
    $region24: #{tpu_custom_call.1} parent=1 // pred_region
      %54 = dma.done [#allocation9], 128
    $region25: #{tpu_custom_call.1} parent=1 // pred_fallthru
      _
    // Predicated region
    $region26: #{tpu_custom_call.1} parent=1 // pred_check
      _
    $region27: #{tpu_custom_call.1} parent=1 // pred_check_branch
      %56 = sbr.rel (0) target = $region29
    $region28: #{tpu_custom_call.1} parent=1 // pred_region
      %58 = dma.done [#allocation9], 128
    $region29: #{tpu_custom_call.1} parent=1 // pred_fallthru
      _
    %p59 = scmp.eq.s32.totalorder 0, 0
    // Predicated region
    $region30: #{tpu_custom_call.1} parent=1 // pred_check
      %p60 = pneg %p59
    $region31: #{tpu_custom_call.1} parent=1 // pred_check_branch
      %62 = sbr.rel (%p60) target = $region33
    $region32: #{tpu_custom_call.1} parent=1 // pred_region
      %v63 = vld [vmem:[#allocation5] sm:$0xff]
      %v64 = vmul.f32 %v63, %v63
      %vm65 = vcmask 261120
      %v66 = vsel %vm65, %v64, 0.0
      %67 = vadd.xlane.f32.xlu0 %v66
      %v68 = vpop.xlane.xlu0 %67
      %v69 = vmax.f32 %v68, 1e-24
      %v70 = vrsqrt.pop %v69
      %v71 = vmul.f32 %v70, %v69
      %v72 = vmul.f32 %v71, %v70
      %v73 = vmul.f32 0.5, %v72
      %v74 = vsub.f32 1.5, %v73
      %v75 = vmul.f32 %v70, %v74
      %vm76 = vweird.f32 %v69
      %vm77 = vweird.f32 %v70
      %vm78 = vmor %vm76, %vm77
      %v79 = vsel %vm78, %v70, %v75
      %v80 = vmul.f32 %v63, %v79
      %v81 = vld [vmem:[#allocation8] sm:$0xff]
      %v82 = vmul.f32 %v81, %v81
      %v83 = vsel %vm65, %v82, 0.0
      %84 = vadd.xlane.f32.xlu0 %v83
      %v85 = vpop.xlane.xlu0 %84
      %v86 = vmax.f32 %v85, 1e-24
      %v87 = vrsqrt.pop %v86
      %v88 = vmul.f32 %v87, %v86
      %v89 = vmul.f32 %v88, %v87
      %v90 = vmul.f32 0.5, %v89
      %v91 = vsub.f32 1.5, %v90
      %v92 = vmul.f32 %v87, %v91
      %vm93 = vweird.f32 %v86
      %vm94 = vweird.f32 %v87
      %vm95 = vmor %vm93, %vm94
      %v96 = vsel %vm95, %v87, %v92
      %v97 = vmul.f32 %v81, %v96
      %v98 = vmul.f32 %v80, %v97
      %v99 = vsel %vm65, %v98, 0.0
      %100 = vadd.xlane.f32.xlu0 %v99
      %v101 = vpop.xlane.xlu0 %100
      %vm102 = vcmask 7168
      %103 = vst.msk [vmem:[#allocation4] sm:$0xff] %vm102, %v101
      %104 = vst.msk [vmem:[#allocation2] sm:$0xff] %vm65, %v80
      %105 = vst.msk [vmem:[#allocation3] sm:$0xff] %vm102, 0.0
    $region33: #{tpu_custom_call.1} parent=1 // pred_fallthru
      _
    %v106 = vld [vmem:[#allocation2] sm:$0xff]
    %v107 = vld [vmem:[#allocation10] sm:$0xff]
    %vm108 = vcmask 261120
    %v110 = vsel %vm108, %v106, 0
    %v113 = vsel %vm108, %v107, 0
    %115 = vmatpush.xpose.msra.mxu0 0.0
    %116 = vmatpush.xpose.msra.mxu0 0.0
    %117 = vmatpush.xpose.msra.mxu0 0.0
    %118 = vmatpush.xpose.msra.mxu0 0.0
    %119 = vmatpush.xpose.msra.mxu0 0.0
    %120 = vmatpush.xpose.msra.mxu0 0.0
    %121 = vmatpush.xpose.msra.mxu0 0.0
    %122 = vmatpush.xpose.msra.mxu0 0.0
    %123 = vmatpush.xpose.msra.mxu0 0.0
    %124 = vmatpush.xpose.msra.mxu0 0.0
    %125 = vmatpush.xpose.msra.mxu0 0.0
    %126 = vmatpush.xpose.msra.mxu0 0.0
    %127 = vmatpush.xpose.msra.mxu0 0.0
    %128 = vmatpush.xpose.msra.mxu0 0.0
    %129 = vmatpush.xpose.msra.mxu0 0.0
    %130 = vmatpush.xpose.msra.mxu0 %v113
    %131 = vmatmul.f32.gmra.mxu0 %v110
    %v132 = vpop.f32.mrf.mxu0
    %v133 = vadd.f32 0.0, %v132
    %134 = vdwg.mxu0
    %v135 = vld [vmem:[%s3] sm:$0x1]
    %v137 = vperm.slane %v135, 0
    %v139 = vmul.f32 %v133, %v137
    %v140 = vld [vmem:[#allocation3] sm:$0xff]
    %v141 = vmul.f32 %v139, 1.442695
    %v142 = vpow.pop %v141
    %vm143 = vcmask 64512
    %v144 = vsel %vm143, %v142, 0.0
    %145 = vadd.xlane.f32.xlu0 %v144
    %v146 = vpop.xlane.xlu0 %145
    %v147 = vadd.f32 %v140, %v146
    %vm148 = vcmask 7168
    %149 = vst.msk [vmem:[#allocation3] sm:$0xff] %vm148, %v147
    // Predicated region
    $region34: #{tpu_custom_call.1} parent=1 // pred_check
      %p150 = pneg %p59
    $region35: #{tpu_custom_call.1} parent=1 // pred_check_branch
      %152 = sbr.rel (%p150) target = $region37
    $region36: #{tpu_custom_call.1} parent=1 // pred_region
      %v153 = vld [vmem:[#allocation3] sm:$0xff]
      %v154 = vlog2.pop %v153
      %v155 = vmul.f32 %v154, 0.6931472
      %v156 = vld [vmem:[#allocation4] sm:$0xff]
      %v157 = vsub.f32 %v155, %v156
      %v158 = vsel %vm148, %v157, 0.0
      %159 = vadd.xlane.f32.xlu0 %v158
      %v160 = vpop.xlane.xlu0 %159
      %v161 = vrot.slane %v160, 4
      %v162 = vadd.f32 %v160, %v161
      %v163 = vrot.slane %v162, 2
      %v164 = vadd.f32 %v162, %v163
      %v165 = vrot.slane %v164, 1
      %v166 = vadd.f32 %v164, %v165
      %s167 = vtos %v166
      %v168 = vstv %s167
      %v169 = vadd.f32 %v168, 0.0
      %170 = vst [vmem:[#allocation11] sm:$0xff] %v169
    $region37: #{tpu_custom_call.1} parent=1 // pred_fallthru
      _
    // Predicated region
    $region38: #{tpu_custom_call.1} parent=1 // pred_check
      _
    $region39: #{tpu_custom_call.1} parent=1 // pred_check_branch
      %172 = sbr.rel (0) target = $region41
    $region40: #{tpu_custom_call.1} parent=1 // pred_region
      %174 = vsyncadd [#allocation7], 0
      %s176 = sshll.u32 [#allocation11], 4
      %s177 = int_to_ptr.vmem [resolvable:$true] %s176
      %s178 = sshll.u32 %s4, 4
      %s179 = int_to_ptr.hbm [resolvable:$true] %s178
      %181 = dma.vmem_to_hbm [thread:$0]  %s177, 128, %s179, [#allocation7]
    $region41: #{tpu_custom_call.1} parent=1 // pred_fallthru
      _
    // Predicated region
    $region42: #{tpu_custom_call.1} parent=1 // pred_check
      _
    $region43: #{tpu_custom_call.1} parent=1 // pred_check_branch
      %183 = sbr.rel (0) target = $region45
    $region44: #{tpu_custom_call.1} parent=1 // pred_region
      %185 = dma.done [#allocation7], 128
    $region45: #{tpu_custom_call.1} parent=1 // pred_fallthru
      _
    %186 = vsyncpa [#allocation6], 1
    %187 = vsyncpa [#allocation9], 1
    %188 = vsyncpa [#allocation7], 1

// kernel: tpu_custom_call.1
$region0: #{tpu_custom_call.1}
  #allocation0 [shape = 'u32[]', space=smem, size = 0x4, offset = 0x4, fixed_abs, tag = 'smem constant byte address 0x4 - core index']
  #allocation1 [shape = 'u32[72,128]{1,0:T(1,128)}', space=vmem, size = 0x9000, scoped, tag = 'internal scratch']
  #allocation2 [shape = 'f32[8,32]{1,0:T(8,128)}', space=vmem, size = 0x1000, scoped, tag = 'scratch operand']
  #allocation3 [shape = 'f32[8,1]{1,0:T(8,128)}', space=vmem, size = 0x1000, scoped, tag = 'scratch operand']
  #allocation4 [shape = 'f32[8,1]{1,0:T(8,128)}', space=vmem, size = 0x1000, scoped, tag = 'scratch operand']
  %s0 = inlined_call_operand.hbm [shape: f32[8,32], index: 0, kind: input, shape index: {}]
  %s1 = inlined_call_operand.hbm [shape: f32[8,32], index: 1, kind: input, shape index: {}]
  %s2 = inlined_call_operand.hbm [shape: f32[8,32], index: 2, kind: input, shape index: {}]
  %s3 = inlined_call_operand.vmem [shape: f32[1,8], index: 3, kind: input, shape index: {}]
  %s4 = inlined_call_operand.hbm [shape: f32[8,128], index: 4, kind: output, shape index: {}]
  %s5 = sld [smem:[#allocation0]]
  $region46: #{tpu_custom_call.1} parent=0
    _
  %s7 = ssub.s32 1, %s5
  %s8 = scalar_select 0, %s7, %s5
  $region1: #{tpu_custom_call.1} parent=0
    #allocation5 [shape = 'u8[4096]{0}', space=vmem, size = 0x1000, scoped, tag = 'input window, operand 0, single buffered']
    #allocation6 [shape = 's32[1]{0}', space=sflag, size = 0x4, scoped, tag = 'scoped memory for tpu_custom_call.1']
    #allocation7 [shape = 's32[1]{0}', space=sflag, size = 0x4, scoped, tag = 'scoped memory for tpu_custom_call.1']
    #allocation8 [shape = 'u8[4096]{0}', space=vmem, size = 0x1000, scoped, tag = 'input window, operand 1, single buffered']
    #allocation9 [shape = 's32[1]{0}', space=sflag, size = 0x4, scoped, tag = 'scoped memory for tpu_custom_call.1']
    #allocation10 [shape = 'u8[4096]{0}', space=vmem, size = 0x1000, scoped, tag = 'input window, operand 2, single buffered']
    #allocation11 [shape = 'u8[4096]{0}', space=vmem, size = 0x1000, scoped, tag = 'output window, operand 0, single buffered']
    %9 = vsyncpa [#allocation6], 0
    %10 = vsyncpa [#allocation9], 0
    %11 = vsyncpa [#allocation7], 0
    // Predicated region
    $region2: #{tpu_custom_call.1} parent=1 // pred_check
      _
    $region3: #{tpu_custom_call.1} parent=1 // pred_check_branch
      %13 = sbr.rel (0) target = $region5
    $region4: #{tpu_custom_call.1} parent=1 // pred_region
      %15 = vsyncadd [#allocation6], 0
      %s17 = sshll.u32 %s0, 4
      %s18 = int_to_ptr.hbm [resolvable:$true] %s17
      %s19 = sshll.u32 [#allocation5], 4
      %s20 = int_to_ptr.vmem [resolvable:$true] %s19
      %22 = dma.hbm_to_vmem [thread:$0]  %s18, 128, %s20, [#allocation6]
    $region5: #{tpu_custom_call.1} parent=1 // pred_fallthru
      _
    // Predicated region
    $region6: #{tpu_custom_call.1} parent=1 // pred_check
      _
    $region7: #{tpu_custom_call.1} parent=1 // pred_check_branch
      %24 = sbr.rel (0) target = $region9
    $region8: #{tpu_custom_call.1} parent=1 // pred_region
      %26 = vsyncadd [#allocation9], 0
      %s28 = sshll.u32 %s1, 4
      %s29 = int_to_ptr.hbm [resolvable:$true] %s28
      %s30 = sshll.u32 [#allocation8], 4
      %s31 = int_to_ptr.vmem [resolvable:$true] %s30
      %33 = dma.hbm_to_vmem [thread:$0]  %s29, 128, %s31, [#allocation9]
    $region9: #{tpu_custom_call.1} parent=1 // pred_fallthru
      _
    // Predicated region
    $region10: #{tpu_custom_call.1} parent=1 // pred_check
      _
    $region11: #{tpu_custom_call.1} parent=1 // pred_check_branch
      %35 = sbr.rel (0) target = $region13
    $region12: #{tpu_custom_call.1} parent=1 // pred_region
      %37 = vsyncadd [#allocation9], 0
      %s39 = sshll.u32 %s2, 4
      %s40 = int_to_ptr.hbm [resolvable:$true] %s39
      %s41 = sshll.u32 [#allocation10], 4
      %s42 = int_to_ptr.vmem [resolvable:$true] %s41
      %44 = dma.hbm_to_vmem [thread:$0]  %s40, 128, %s42, [#allocation9]
    $region13: #{tpu_custom_call.1} parent=1 // pred_fallthru
      _
    // Predicated region
    $region14: #{tpu_custom_call.1} parent=1 // pred_check
      _
    $region15: #{tpu_custom_call.1} parent=1 // pred_check_branch
      %46 = sbr.rel (0) target = $region17
    $region16: #{tpu_custom_call.1} parent=1 // pred_region
      _
    $region17: #{tpu_custom_call.1} parent=1 // pred_fallthru
      _
    // Predicated region
    $region18: #{tpu_custom_call.1} parent=1 // pred_check
      _
    $region19: #{tpu_custom_call.1} parent=1 // pred_check_branch
      %48 = sbr.rel (0) target = $region21
    $region20: #{tpu_custom_call.1} parent=1 // pred_region
      %50 = dma.done [#allocation6], 128
    $region21: #{tpu_custom_call.1} parent=1 // pred_fallthru
      _
    // Predicated region
    $region22: #{tpu_custom_call.1} parent=1 // pred_check
      _
    $region23: #{tpu_custom_call.1} parent=1 // pred_check_branch
      %52 = sbr.rel (0) target = $region25
    $region24: #{tpu_custom_call.1} parent=1 // pred_region
      %54 = dma.done [#allocation9], 128
    $region25: #{tpu_custom_call.1} parent=1 // pred_fallthru
      _
    // Predicated region
    $region26: #{tpu_custom_call.1} parent=1 // pred_check
      _
    $region27: #{tpu_custom_call.1} parent=1 // pred_check_branch
      %56 = sbr.rel (0) target = $region29
    $region28: #{tpu_custom_call.1} parent=1 // pred_region
      %58 = dma.done [#allocation9], 128
    $region29: #{tpu_custom_call.1} parent=1 // pred_fallthru
      _
    %p59 = scmp.eq.s32.totalorder 0, 0
    // Predicated region
    $region30: #{tpu_custom_call.1} parent=1 // pred_check
      %p60 = pneg %p59
    $region31: #{tpu_custom_call.1} parent=1 // pred_check_branch
      %62 = sbr.rel (%p60) target = $region33
    $region32: #{tpu_custom_call.1} parent=1 // pred_region
      %v63 = vld [vmem:[#allocation5] sm:$0xff]
      %v64 = vmul.f32 %v63, %v63
      %vm65 = vcmask 261120
      %v66 = vsel %vm65, %v64, 0.0
      %67 = vadd.xlane.f32.xlu0 %v66
      %v68 = vpop.xlane.xlu0 %67
      %v69 = vmax.f32 %v68, 1e-24
      %v70 = vrsqrt.pop %v69
      %v71 = vmul.f32 %v70, %v69
      %v72 = vmul.f32 %v71, %v70
      %v73 = vmul.f32 0.5, %v72
      %v74 = vsub.f32 1.5, %v73
      %v75 = vmul.f32 %v70, %v74
      %vm76 = vweird.f32 %v69
      %vm77 = vweird.f32 %v70
      %vm78 = vmor %vm76, %vm77
      %v79 = vsel %vm78, %v70, %v75
      %v80 = vmul.f32 %v63, %v79
      %v81 = vld [vmem:[#allocation8] sm:$0xff]
      %v82 = vmul.f32 %v81, %v81
      %v83 = vsel %vm65, %v82, 0.0
      %84 = vadd.xlane.f32.xlu0 %v83
      %v85 = vpop.xlane.xlu0 %84
      %v86 = vmax.f32 %v85, 1e-24
      %v87 = vrsqrt.pop %v86
      %v88 = vmul.f32 %v87, %v86
      %v89 = vmul.f32 %v88, %v87
      %v90 = vmul.f32 0.5, %v89
      %v91 = vsub.f32 1.5, %v90
      %v92 = vmul.f32 %v87, %v91
      %vm93 = vweird.f32 %v86
      %vm94 = vweird.f32 %v87
      %vm95 = vmor %vm93, %vm94
      %v96 = vsel %vm95, %v87, %v92
      %v97 = vmul.f32 %v81, %v96
      %v98 = vmul.f32 %v80, %v97
      %v99 = vsel %vm65, %v98, 0.0
      %100 = vadd.xlane.f32.xlu0 %v99
      %v101 = vpop.xlane.xlu0 %100
      %vm102 = vcmask 7168
      %103 = vst.msk [vmem:[#allocation4] sm:$0xff] %vm102, %v101
      %104 = vst.msk [vmem:[#allocation2] sm:$0xff] %vm65, %v80
      %105 = vst.msk [vmem:[#allocation3] sm:$0xff] %vm102, 0.0
    $region33: #{tpu_custom_call.1} parent=1 // pred_fallthru
      _
    %v106 = vld [vmem:[#allocation2] sm:$0xff]
    %v107 = vld [vmem:[#allocation10] sm:$0xff]
    %vm108 = vcmask 261120
    %v110 = vsel %vm108, %v106, 0
    %v113 = vsel %vm108, %v107, 0
    %115 = vmatpush.xpose.msra.mxu0 0.0
    %116 = vmatpush.xpose.msra.mxu0 0.0
    %117 = vmatpush.xpose.msra.mxu0 0.0
    %118 = vmatpush.xpose.msra.mxu0 0.0
    %119 = vmatpush.xpose.msra.mxu0 0.0
    %120 = vmatpush.xpose.msra.mxu0 0.0
    %121 = vmatpush.xpose.msra.mxu0 0.0
    %122 = vmatpush.xpose.msra.mxu0 0.0
    %123 = vmatpush.xpose.msra.mxu0 0.0
    %124 = vmatpush.xpose.msra.mxu0 0.0
    %125 = vmatpush.xpose.msra.mxu0 0.0
    %126 = vmatpush.xpose.msra.mxu0 0.0
    %127 = vmatpush.xpose.msra.mxu0 0.0
    %128 = vmatpush.xpose.msra.mxu0 0.0
    %129 = vmatpush.xpose.msra.mxu0 0.0
    %130 = vmatpush.xpose.msra.mxu0 %v113
    %131 = vmatmul.f32.gmra.mxu0 %v110
    %v132 = vpop.f32.mrf.mxu0
    %v133 = vadd.f32 0.0, %v132
    %134 = vdwg.mxu0
    %v135 = vld [vmem:[%s3] sm:$0x1]
    %v137 = vperm.slane %v135, 0
    %v139 = vmul.f32 %v133, %v137
    %v140 = vld [vmem:[#allocation3] sm:$0xff]
    %v141 = vmul.f32 %v139, 1.442695
    %v142 = vpow.pop %v141
    %vm143 = vcmask 64512
    %v144 = vsel %vm143, %v142, 0.0
    %145 = vadd.xlane.f32.xlu0 %v144
    %v146 = vpop.xlane.xlu0 %145
    %v147 = vadd.f32 %v140, %v146
    %vm148 = vcmask 7168
    %149 = vst.msk [vmem:[#allocation3] sm:$0xff] %vm148, %v147
    // Predicated region
    $region34: #{tpu_custom_call.1} parent=1 // pred_check
      %p150 = pneg %p59
    $region35: #{tpu_custom_call.1} parent=1 // pred_check_branch
      %152 = sbr.rel (%p150) target = $region37
    $region36: #{tpu_custom_call.1} parent=1 // pred_region
      %v153 = vld [vmem:[#allocation3] sm:$0xff]
      %v154 = vlog2.pop %v153
      %v155 = vmul.f32 %v154, 0.6931472
      %v156 = vld [vmem:[#allocation4] sm:$0xff]
      %v157 = vsub.f32 %v155, %v156
      %v158 = vsel %vm148, %v157, 0.0
      %159 = vadd.xlane.f32.xlu0 %v158
      %v160 = vpop.xlane.xlu0 %159
      %v161 = vrot.slane %v160, 4
      %v162 = vadd.f32 %v160, %v161
      %v163 = vrot.slane %v162, 2
      %v164 = vadd.f32 %v162, %v163
      %v165 = vrot.slane %v164, 1
      %v166 = vadd.f32 %v164, %v165
      %s167 = vtos %v166
      %v168 = vstv %s167
      %v169 = vadd.f32 %v168, 0.0
      %170 = vst [vmem:[#allocation11] sm:$0xff] %v169
    $region37: #{tpu_custom_call.1} parent=1 // pred_fallthru
      _
    // Predicated region
    $region38: #{tpu_custom_call.1} parent=1 // pred_check
      _
    $region39: #{tpu_custom_call.1} parent=1 // pred_check_branch
      %172 = sbr.rel (0) target = $region41
    $region40: #{tpu_custom_call.1} parent=1 // pred_region
      %174 = vsyncadd [#allocation7], 0
      %s176 = sshll.u32 [#allocation11], 4
      %s177 = int_to_ptr.vmem [resolvable:$true] %s176
      %s178 = sshll.u32 %s4, 4
      %s179 = int_to_ptr.hbm [resolvable:$true] %s178
      %181 = dma.vmem_to_hbm [thread:$0]  %s177, 128, %s179, [#allocation7]
    $region41: #{tpu_custom_call.1} parent=1 // pred_fallthru
      _
    // Predicated region
    $region42: #{tpu_custom_call.1} parent=1 // pred_check
      _
    $region43: #{tpu_custom_call.1} parent=1 // pred_check_branch
      %183 = sbr.rel (0) target = $region45
    $region44: #{tpu_custom_call.1} parent=1 // pred_region
      %185 = dma.done [#allocation7], 128
    $region45: #{tpu_custom_call.1} parent=1 // pred_fallthru
      _
    %186 = vsyncpa [#allocation6], 1
    %187 = vsyncpa [#allocation9], 1
    %188 = vsyncpa [#allocation7], 1

</llo_original>
